<compile_context>
chip_gen: v5e
topology: v5e:2x2
jax: 0.10.0
libtpu: 0.0.40
codegen_flags: <defaults>
</compile_context>

<pallas_src>
import jax
import jax.numpy as jnp
from jax import lax
from jax.experimental import pallas as pl
from jax.experimental.pallas import tpu as pltpu


# ----------------------------------------------------------------------------
# Kernels
# ----------------------------------------------------------------------------
def _kv_proj_kernel(k_ref, v_ref, wk_ref, bk_ref, wv_ref, bv_ref, kp_ref, vp_ref):
    # k_ref / v_ref: (ts, H) f32    w*_ref: (H, H) bf16    b*_ref: (1, H) f32
    # kp_ref / vp_ref: (ts, H) bf16
    k = k_ref[...].astype(jnp.bfloat16)
    v = v_ref[...].astype(jnp.bfloat16)
    kp = jnp.dot(k, wk_ref[...], preferred_element_type=jnp.float32) + bk_ref[...]
    vp = jnp.dot(v, wv_ref[...], preferred_element_type=jnp.float32) + bv_ref[...]
    kp_ref[...] = kp.astype(kp_ref.dtype)
    vp_ref[...] = vp.astype(vp_ref.dtype)


def _attention_kernel(q_ref, kp_ref, vp_ref,
                      wq_ref, bq_ref, wo_ref, bo_ref,
                      o_ref):
    # q_ref: (tq, H) f32   kp_ref / vp_ref: (S, H) bf16
    # w*_ref: (H, H) bf16  b*_ref: (1, H) f32    o_ref: (tq, H) f32
    H = q_ref.shape[-1]
    scale = 1.0 / (float(H) ** 0.5)

    # Q projection for this tile; 1/sqrt(H) folded into qp (O(tq*H) elements)
    # instead of scaling the (tq, S) score matrix.
    qp = (jnp.dot(q_ref[...].astype(jnp.bfloat16), wq_ref[...],
                  preferred_element_type=jnp.float32) + bq_ref[...]) * scale
    qp = qp.astype(jnp.bfloat16)

    # Scores (tq, S): contract on H directly — no materialized Kp transpose.
    scores = lax.dot_general(
        qp, kp_ref[...],
        dimension_numbers=(((1,), (1,)), ((), ())),
        preferred_element_type=jnp.float32)

    # Numerically stable softmax with DEFERRED normalization: never build the
    # normalized (tq, S) matrix; normalize the (tq, H) context instead.
    m = jnp.max(scores, axis=-1, keepdims=True)
    e = jnp.exp(scores - m)                               # (tq, S) f32
    denom = jnp.sum(e, axis=-1, keepdims=True)            # (tq, 1) f32

    ctx = jnp.dot(e.astype(jnp.bfloat16), vp_ref[...],
                  preferred_element_type=jnp.float32)     # (tq, H) unnormalized
    ctx = ctx * pl.reciprocal(denom, approx=True)         # normalize (tq, H)

    # Dropout: identity in eval mode.

    out = jnp.dot(ctx.astype(jnp.bfloat16), wo_ref[...],
                  preferred_element_type=jnp.float32) + bo_ref[...]
    o_ref[...] = out.astype(o_ref.dtype)


# ----------------------------------------------------------------------------
# Wrappers
# ----------------------------------------------------------------------------
def _vmem_limit_bytes(resident_bytes):
    # Derived from actual per-step buffer residency (not a flat 48 MiB), capped
    # below physical per-core VMEM with headroom for compiler internal scratch
    # (v7x has only 64 MiB/TC; v5e/v6e have 128 MiB).
    try:
        cap = int(pltpu.get_tpu_info().vmem_capacity_bytes)
    except Exception:
        cap = 64 * 1024 * 1024  # conservative v7x-sized fallback
    derived = max(int(resident_bytes) * 3 // 2, 32 * 1024 * 1024)
    return int(min(derived, cap * 85 // 100))


def _project_kv(key, value, params, *, ts):
    """Kp = key @ Wk + bk, Vp = value @ Wv + bv, written to HBM as bf16."""
    B, S, H = key.shape
    x_spec = pl.BlockSpec((pl.Squeezed(), ts, H), lambda b, si: (b, si, 0))
    w_spec = pl.BlockSpec((H, H), lambda b, si: (0, 0))
    b_spec = pl.BlockSpec((1, H), lambda b, si: (0, 0))

    resident = (2 * 2 * ts * H * 4        # k, v input blocks (f32, 2 buffers each)
                + 2 * 2 * ts * H * 2      # kp, vp output blocks (bf16)
                + 2 * 2 * H * H * 2       # wk, wv (bf16)
                + 2 * 2 * 8 * H * 4       # padded biases
                + 4 * ts * H * 4)         # f32 temporaries
    cost = pl.CostEstimate(
        flops=2 * B * 2 * S * H * H,
        transcendentals=0,
        bytes_accessed=2 * B * S * H * 4 + 2 * B * S * H * 2 + 2 * H * H * 2 + 2 * H * 4)

    return pl.pallas_call(
        _kv_proj_kernel,
        out_shape=(jax.ShapeDtypeStruct((B, S, H), jnp.bfloat16),
                   jax.ShapeDtypeStruct((B, S, H), jnp.bfloat16)),
        grid_spec=pltpu.PrefetchScalarGridSpec(
            num_scalar_prefetch=0,
            grid=(B, S // ts),
            in_specs=[x_spec, x_spec, w_spec, b_spec, w_spec, b_spec],
            out_specs=(x_spec, x_spec),
        ),
        compiler_params=pltpu.CompilerParams(
            dimension_semantics=("parallel", "parallel"),
            vmem_limit_bytes=_vmem_limit_bytes(resident)),
        cost_estimate=cost,
    )(key, value, params["wk"], params["bk"], params["wv"], params["bv"])


def simple_attention(query, key, value, params, *, tq=256):
    """query/key/value: (B, S, H) float32. params: bf16 (in,out) weights, f32 (1,H) biases."""
    B, S, H = query.shape
    assert H % 128 == 0, "hidden size should be a multiple of 128 for lane-dense tiles"
    tq = min(tq, S)
    assert S % tq == 0, "sequence length must be divisible by the query tile"
    ts = min(256, S)
    assert S % ts == 0, "sequence length must be divisible by the K/V projection tile"

    # Stage 1: K/V projections once per (batch, seq-tile) -> bf16 Kp/Vp in HBM.
    kp, vp = _project_kv(key, value, params, ts=ts)

    # Stage 2: attention over query tiles.
    q_spec = pl.BlockSpec((pl.Squeezed(), tq, H), lambda b, qi: (b, qi, 0))
    kv_spec = pl.BlockSpec((pl.Squeezed(), S, H), lambda b, qi: (b, 0, 0))
    out_spec = pl.BlockSpec((pl.Squeezed(), tq, H), lambda b, qi: (b, qi, 0))
    w_spec = pl.BlockSpec((H, H), lambda b, qi: (0, 0))
    b_spec = pl.BlockSpec((1, H), lambda b, qi: (0, 0))

    resident = (2 * tq * H * 4            # q blocks (f32, 2 buffers)
                + 2 * 2 * S * H * 2       # kp, vp blocks (bf16, 2 buffers each)
                + 2 * tq * H * 4          # output blocks (f32, 2 buffers)
                + 2 * 2 * H * H * 2       # wq, wo (bf16)
                + 2 * 2 * 8 * H * 4       # padded biases
                + 3 * tq * S * 4          # scores / exp temporaries (f32)
                + 4 * tq * H * 4)         # misc f32 temporaries
    cost = pl.CostEstimate(
        flops=2 * B * (2 * S * H * H + 2 * S * S * H),
        transcendentals=B * S * S,
        bytes_accessed=(B * S * H * 4            # q read (f32)
                        + 2 * B * S * H * 2      # kp, vp read (bf16)
                        + B * S * H * 4          # output write (f32)
                        + 2 * H * H * 2 + 2 * H * 4))

    return pl.pallas_call(
        _attention_kernel,
        # f32 output matches the PyTorch module; use bf16 here if downstream
        # tolerates it (halves output writeback).
        out_shape=jax.ShapeDtypeStruct((B, S, H), query.dtype),
        grid_spec=pltpu.PrefetchScalarGridSpec(
            num_scalar_prefetch=0,
            grid=(B, S // tq),
            in_specs=[q_spec, kv_spec, kv_spec,
                      w_spec, b_spec, w_spec, b_spec],
            out_specs=out_spec,
        ),
        compiler_params=pltpu.CompilerParams(
            # No cross-step scratch carried along qi anymore, so BOTH axes are
            # independent -> parallel (lets v7x's 2 TensorCores split q-tiles
            # even at batch 1-2; harmless hint on single-TC v5e/v6e).
            dimension_semantics=("parallel", "parallel"),
            vmem_limit_bytes=_vmem_limit_bytes(resident)),
        cost_estimate=cost,
    )(query, kp, vp,
      params["wq"], params["bq"], params["wo"], params["bo"])


# ----------------------------------------------------------------------------
# Parameters & reference
# ----------------------------------------------------------------------------
def init_params(key, hidden):
    # nn.Linear-style init. Weights stored transposed to (in, out) and in bf16
    # (halves weight DMA + VMEM); biases kept f32 as (1, hidden).
    ks = jax.random.split(key, 8)
    bound = 1.0 / (hidden ** 0.5)

    def lin(kw, kb):
        w = jax.random.uniform(kw, (hidden, hidden), jnp.float32, -bound, bound)
        b = jax.random.uniform(kb, (1, hidden), jnp.float32, -bound, bound)
        return w.T.astype(jnp.bfloat16), b

    wq, bq = lin(ks[0], ks[1])
    wk, bk = lin(ks[2], ks[3])
    wv, bv = lin(ks[4], ks[5])
    wo, bo = lin(ks[6], ks[7])
    return dict(wq=wq, bq=bq, wk=wk, bk=bk, wv=wv, bv=bv, wo=wo, bo=bo)


def _reference(query, key, value, p):
    # Pure-JAX reference mirroring the kernel's precision choices
    # (bf16 matmul operands, f32 accumulation, f32 softmax).
    H = query.shape[-1]
    scale = 1.0 / (float(H) ** 0.5)
    bf, f32 = jnp.bfloat16, jnp.float32

    def proj(x, w, b):
        return jnp.einsum("bsh,hk->bsk", x.astype(bf), w.astype(bf),
                          preferred_element_type=f32) + b

    qp = (proj(query, p["wq"], p["bq"]) * scale).astype(bf)
    kp = proj(key, p["wk"], p["bk"]).astype(bf)
    vp = proj(value, p["wv"], p["bv"]).astype(bf)
    scores = jnp.einsum("bqh,bkh->bqk", qp, kp, preferred_element_type=f32)
    attn = jax.nn.softmax(scores, axis=-1)
    ctx = jnp.einsum("bqk,bkh->bqh", attn.astype(bf), vp,
                     preferred_element_type=f32)
    return jnp.einsum("bqh,hk->bqk", ctx.astype(bf), p["wo"].astype(bf),
                      preferred_element_type=f32) + p["bo"]


if __name__ == "__main__":
    # Lane-dense small shapes: H multiple of 128, two q-tiles and two seq-tiles
    # per batch so both grids and the kp/vp reuse across q-tiles are exercised.
    B, S, H = 2, 512, 128
    root = jax.random.PRNGKey(0)
    kq, kk, kv, kparams = jax.random.split(root, 4)

    query = jax.random.normal(kq, (B, S, H), jnp.float32)
    key_in = jax.random.normal(kk, (B, S, H), jnp.float32)
    value = jax.random.normal(kv, (B, S, H), jnp.float32)
    params = init_params(kparams, H)

    out = simple_attention(query, key_in, value, params)
    out = jax.block_until_ready(out)

    ref = _reference(query, key_in, value, params)
    assert out.shape == (B, S, H)
    assert jnp.allclose(out, ref, atol=2e-2, rtol=2e-2), "mismatch vs reference"

    print("KERNEL_OK")
</pallas_src>

<mosaic_0001>
module attributes {stable_mosaic.version = 11 : i64} {
  func.func @_kv_proj_kernel(%arg0: i32, %arg1: i32, %arg2: memref<1x256x128xf32, #tpu.memory_space<vmem>>, %arg3: memref<1x256x128xf32, #tpu.memory_space<vmem>>, %arg4: memref<128x128xbf16, #tpu.memory_space<vmem>>, %arg5: memref<1x128xf32, #tpu.memory_space<vmem>>, %arg6: memref<128x128xbf16, #tpu.memory_space<vmem>>, %arg7: memref<1x128xf32, #tpu.memory_space<vmem>>, %arg8: memref<1x256x128xbf16, #tpu.memory_space<vmem>>, %arg9: memref<1x256x128xbf16, #tpu.memory_space<vmem>>) attributes {dimension_semantics = [#tpu.dimension_semantics<parallel>, #tpu.dimension_semantics<parallel>], iteration_bounds = array<i64: 2, 2>, scalar_prefetch = 0 : i64, scratch_operands = 0 : i64, tpu.core_type = #tpu.core_type<tc>, window_params = [{transform_indices = @transform_0, window_bounds = array<i64: 1, 256, 128>}, {transform_indices = @transform_1, window_bounds = array<i64: 1, 256, 128>}, {pipeline_mode = #tpu.pipeline_mode<synchronous>, transform_indices = @transform_2, window_bounds = array<i64: 128, 128>}, {pipeline_mode = #tpu.pipeline_mode<synchronous>, transform_indices = @transform_3, window_bounds = array<i64: 1, 128>}, {pipeline_mode = #tpu.pipeline_mode<synchronous>, transform_indices = @transform_4, window_bounds = array<i64: 128, 128>}, {pipeline_mode = #tpu.pipeline_mode<synchronous>, transform_indices = @transform_5, window_bounds = array<i64: 1, 128>}, {transform_indices = @transform_6, window_bounds = array<i64: 1, 256, 128>}, {transform_indices = @transform_7, window_bounds = array<i64: 1, 256, 128>}]} {
    %c0 = arith.constant 0 : index
    %c0_0 = arith.constant 0 : index
    %c0_1 = arith.constant 0 : index
    %0 = vector.load %arg2[%c0, %c0_0, %c0_1] : memref<1x256x128xf32, #tpu.memory_space<vmem>>, vector<1x256x128xf32>
    %1 = vector.shape_cast %0 : vector<1x256x128xf32> to vector<256x128xf32>
    %2 = arith.truncf %1 : vector<256x128xf32> to vector<256x128xbf16>
    %c0_2 = arith.constant 0 : index
    %c0_3 = arith.constant 0 : index
    %c0_4 = arith.constant 0 : index
    %3 = vector.load %arg3[%c0_2, %c0_3, %c0_4] : memref<1x256x128xf32, #tpu.memory_space<vmem>>, vector<1x256x128xf32>
    %4 = vector.shape_cast %3 : vector<1x256x128xf32> to vector<256x128xf32>
    %5 = arith.truncf %4 : vector<256x128xf32> to vector<256x128xbf16>
    %c0_5 = arith.constant 0 : index
    %c0_6 = arith.constant 0 : index
    %6 = vector.load %arg4[%c0_5, %c0_6] : memref<128x128xbf16, #tpu.memory_space<vmem>>, vector<128x128xbf16>
    %cst = arith.constant dense<0.000000e+00> : vector<256x128xf32>
    %7 = tpu.matmul %2, %6, %cst {dimension_numbers = #tpu.dot_dimension_numbers<[1], [0], [0], [1], [0, 0, 1, 1], [], []>} : vector<256x128xbf16>, vector<128x128xbf16>, vector<256x128xf32> -> vector<256x128xf32>
    %c0_7 = arith.constant 0 : index
    %c0_8 = arith.constant 0 : index
    %8 = vector.load %arg5[%c0_7, %c0_8] : memref<1x128xf32, #tpu.memory_space<vmem>>, vector<1x128xf32>
    %9 = vector.broadcast %8 : vector<1x128xf32> to vector<256x128xf32>
    %10 = arith.addf %7, %9 : vector<256x128xf32>
    %c0_9 = arith.constant 0 : index
    %c0_10 = arith.constant 0 : index
    %11 = vector.load %arg6[%c0_9, %c0_10] : memref<128x128xbf16, #tpu.memory_space<vmem>>, vector<128x128xbf16>
    %cst_11 = arith.constant dense<0.000000e+00> : vector<256x128xf32>
    %12 = tpu.matmul %5, %11, %cst_11 {dimension_numbers = #tpu.dot_dimension_numbers<[1], [0], [0], [1], [0, 0, 1, 1], [], []>} : vector<256x128xbf16>, vector<128x128xbf16>, vector<256x128xf32> -> vector<256x128xf32>
    %c0_12 = arith.constant 0 : index
    %c0_13 = arith.constant 0 : index
    %13 = vector.load %arg7[%c0_12, %c0_13] : memref<1x128xf32, #tpu.memory_space<vmem>>, vector<1x128xf32>
    %14 = vector.broadcast %13 : vector<1x128xf32> to vector<256x128xf32>
    %15 = arith.addf %12, %14 : vector<256x128xf32>
    %16 = arith.truncf %10 : vector<256x128xf32> to vector<256x128xbf16>
    %c0_14 = arith.constant 0 : index
    %c0_15 = arith.constant 0 : index
    %c0_16 = arith.constant 0 : index
    %17 = vector.load %arg8[%c0_14, %c0_15, %c0_16] : memref<1x256x128xbf16, #tpu.memory_space<vmem>>, vector<1x256x128xbf16>
    %18 = vector.shape_cast %17 : vector<1x256x128xbf16> to vector<256x128xbf16>
    %19 = vector.shape_cast %16 : vector<256x128xbf16> to vector<1x256x128xbf16>
    tpu.vector_store %arg8[%c0_14, %c0_15, %c0_16], %19 {strides = array<i32>} : memref<1x256x128xbf16, #tpu.memory_space<vmem>>, vector<1x256x128xbf16>,
    %20 = arith.truncf %15 : vector<256x128xf32> to vector<256x128xbf16>
    %c0_17 = arith.constant 0 : index
    %c0_18 = arith.constant 0 : index
    %c0_19 = arith.constant 0 : index
    %21 = vector.load %arg9[%c0_17, %c0_18, %c0_19] : memref<1x256x128xbf16, #tpu.memory_space<vmem>>, vector<1x256x128xbf16>
    %22 = vector.shape_cast %21 : vector<1x256x128xbf16> to vector<256x128xbf16>
    %23 = vector.shape_cast %20 : vector<256x128xbf16> to vector<1x256x128xbf16>
    tpu.vector_store %arg9[%c0_17, %c0_18, %c0_19], %23 {strides = array<i32>} : memref<1x256x128xbf16, #tpu.memory_space<vmem>>, vector<1x256x128xbf16>,
    return
  }
  func.func @transform_0(%arg0: i32, %arg1: i32) -> (i32, i32, i32) {
    %c0_i32 = arith.constant 0 : i32
    %c0_i32_0 = arith.constant 0 : i32
    return %arg0, %arg1, %c0_i32 : i32, i32, i32
  }
  func.func @transform_1(%arg0: i32, %arg1: i32) -> (i32, i32, i32) {
    %c0_i32 = arith.constant 0 : i32
    %c0_i32_0 = arith.constant 0 : i32
    return %arg0, %arg1, %c0_i32 : i32, i32, i32
  }
  func.func @transform_2(%arg0: i32, %arg1: i32) -> (i32, i32) {
    %c0_i32 = arith.constant 0 : i32
    %c0_i32_0 = arith.constant 0 : i32
    %c0_i32_1 = arith.constant 0 : i32
    return %c0_i32, %c0_i32_0 : i32, i32
  }
  func.func @transform_3(%arg0: i32, %arg1: i32) -> (i32, i32) {
    %c0_i32 = arith.constant 0 : i32
    %c0_i32_0 = arith.constant 0 : i32
    %c0_i32_1 = arith.constant 0 : i32
    return %c0_i32, %c0_i32_0 : i32, i32
  }
  func.func @transform_4(%arg0: i32, %arg1: i32) -> (i32, i32) {
    %c0_i32 = arith.constant 0 : i32
    %c0_i32_0 = arith.constant 0 : i32
    %c0_i32_1 = arith.constant 0 : i32
    return %c0_i32, %c0_i32_0 : i32, i32
  }
  func.func @transform_5(%arg0: i32, %arg1: i32) -> (i32, i32) {
    %c0_i32 = arith.constant 0 : i32
    %c0_i32_0 = arith.constant 0 : i32
    %c0_i32_1 = arith.constant 0 : i32
    return %c0_i32, %c0_i32_0 : i32, i32
  }
  func.func @transform_6(%arg0: i32, %arg1: i32) -> (i32, i32, i32) {
    %c0_i32 = arith.constant 0 : i32
    %c0_i32_0 = arith.constant 0 : i32
    return %arg0, %arg1, %c0_i32 : i32, i32, i32
  }
  func.func @transform_7(%arg0: i32, %arg1: i32) -> (i32, i32, i32) {
    %c0_i32 = arith.constant 0 : i32
    %c0_i32_0 = arith.constant 0 : i32
    return %arg0, %arg1, %c0_i32 : i32, i32, i32
  }
}

</mosaic_0001>

<llo_original>
// kernel: tpu_custom_call.1
$region0: #{tpu_custom_call.1}
  #allocation0 [shape = 'u32[]', space=smem, size = 0x4, offset = 0x4, fixed_abs, tag = 'smem constant byte address 0x4 - core index']
  #allocation1 [shape = 'u32[72,128]{1,0:T(1,128)}', space=vmem, size = 0x9000, scoped, tag = 'internal scratch']
  %s0 = inlined_call_operand.hbm [shape: f32[2,512,128], index: 0, kind: input, shape index: {}]
  %s1 = inlined_call_operand.hbm [shape: f32[2,512,128], index: 1, kind: input, shape index: {}]
  %s2 = inlined_call_operand.hbm [shape: bf16[128,128], index: 2, kind: input, shape index: {}]
  %s3 = inlined_call_operand.vmem [shape: f32[1,128], index: 3, kind: input, shape index: {}]
  %s4 = inlined_call_operand.hbm [shape: bf16[128,128], index: 4, kind: input, shape index: {}]
  %s5 = inlined_call_operand.vmem [shape: f32[1,128], index: 5, kind: input, shape index: {}]
  %s6 = inlined_call_operand.hbm [shape: bf16[2,512,128], index: 6, kind: output, shape index: {0}]
  %s7 = inlined_call_operand.hbm [shape: bf16[2,512,128], index: 7, kind: output, shape index: {1}]
  %8 = xla_tuple %s6, %s7
  %s9 = sld [smem:[#allocation0]]
  $region81: #{tpu_custom_call.1} parent=0
    _
  %s11 = ssub.s32 1, %s9
  %s12 = scalar_select 0, %s11, %s9
  $region1: #{tpu_custom_call.1} parent=0
    #allocation2 [shape = 'u8[262144]{0}', space=vmem, size = 0x40000, scoped, tag = 'input window, operand 0']
    #allocation3 [shape = 's32[2]{0}', space=sflag, size = 0x8, scoped, tag = 'scoped memory for tpu_custom_call.1']
    #allocation4 [shape = 's32[2]{0}', space=sflag, size = 0x8, scoped, tag = 'scoped memory for tpu_custom_call.1']
    #allocation5 [shape = 'u8[262144]{0}', space=vmem, size = 0x40000, scoped, tag = 'input window, operand 1']
    #allocation6 [shape = 's32[2]{0}', space=sflag, size = 0x8, scoped, tag = 'scoped memory for tpu_custom_call.1']
    #allocation7 [shape = 'u8[32768]{0}', space=vmem, size = 0x8000, scoped, tag = 'input window, operand 2, single buffered']
    #allocation8 [shape = 'u8[32768]{0}', space=vmem, size = 0x8000, scoped, tag = 'input window, operand 4, single buffered']
    #allocation9 [shape = 's32[1]{0}', space=sflag, size = 0x4, scoped, tag = 'scoped memory for tpu_custom_call.1']
    #allocation10 [shape = 'u8[131072]{0}', space=vmem, size = 0x20000, scoped, tag = 'output window, operand 0']
    #allocation11 [shape = 'u8[131072]{0}', space=vmem, size = 0x20000, scoped, tag = 'output window, operand 1']
    #allocation12 [shape = 's32[2]{0}', space=sflag, size = 0x8, scoped, tag = 'scoped memory for tpu_custom_call.1']
    %13 = vsyncpa [#allocation3], 0
    %s14 = scalar_lea.sflag [#allocation3], 1
    %15 = vsyncpa %s14, 0
    %16 = vsyncpa [#allocation6], 0
    %s17 = scalar_lea.sflag [#allocation6], 1
    %18 = vsyncpa %s17, 0
    %19 = vsyncpa [#allocation9], 0
    %20 = vsyncpa [#allocation4], 0
    %s21 = scalar_lea.sflag [#allocation4], 1
    %22 = vsyncpa %s21, 0
    %23 = vsyncpa [#allocation12], 0
    %s24 = scalar_lea.sflag [#allocation12], 1
    %25 = vsyncpa %s24, 0
    loop: start=0, step=1, limit=6
    $region2: #{tpu_custom_call.1} parent=1 // loop_pre_header
      _
    $region3: #{tpu_custom_call.1} parent=1 // loop_header
      %s27 = sphi 0, %s31
      %p28 = scmp.ge.s32.totalorder %s27, 6
      %s34 = sphi 0, %s46
      %s35 = sphi 0, %s42
      %s36 = sphi 0, %s34
      %s37 = sphi 0, %s35
      %s38 = sphi 0, %s36
      %s39 = sphi 0, %s37
      %s51 = sphi 0, %s53
      %s54 = sphi 0, %s51
      %s55 = sphi 0, %s54
      %s71 = sphi 0, %s55
      %s79 = sphi 0, %s81
      %s82 = sphi 0, %s79
      %s83 = sphi 0, %s82
      %s99 = sphi 0, %s83
      %s103 = sphi 0, %s103
      %s105 = sphi 0, %s103
      %s106 = sphi 0, %s105
      %s120 = sphi 0, %s106
      %s124 = sphi 0, %s124
      %s126 = sphi 0, %s124
      %s127 = sphi 0, %s126
      %s141 = sphi 0, %s127
      %s145 = sphi 0, %s145
      %s147 = sphi 0, %s145
      %s148 = sphi 0, %s147
      %s162 = sphi 0, %s148
      %s166 = sphi 0, %s166
      %s168 = sphi 0, %s166
      %s169 = sphi 0, %s168
      %s183 = sphi 0, %s169
      %s191 = sphi 0, %s193
      %s194 = sphi 0, %s191
      %s195 = sphi 0, %s194
      %s211 = sphi 0, %s195
      %s219 = sphi 0, %s221
      %s222 = sphi 0, %s219
      %s223 = sphi 0, %s222
      %s239 = sphi 0, %s223
    $region4: #{tpu_custom_call.1} parent=1 // loop_header_branch
      %30 = sbr.rel (%p28) target = $region8
    $region5: #{tpu_custom_call.1} parent=1 // loop_body
      %s32 = ssub.s32 %s27, 1
      %s33 = ssub.s32 %s27, 2
      %s40 = sadd.s32 1, %s35
      %p41 = scmp.ge.s32.totalorder %s40, 2
      %s42 = scalar_select %p41, 0, %s40
      %s43 = sadd.s32 1, %s34
      %s44 = scalar_select %p41, %s43, %s34
      %p45 = scmp.ge.s32.totalorder %s44, 2
      %s46 = scalar_select %p45, 0, %s44
      %s47 = ssub.s32 %s34, %s46
      %s48 = ssub.s32 %s35, %s42
      %s49 = sor.u32 %s47, %s48
      %p50 = scmp.eq.s32.totalorder %s49, 0
      %s52 = sadd.s32 %s51, 1
      %s53 = scalar_select %p50, %s51, %s52
      %p56 = pneg %p50
      %p57 = scmp.eq.s32.totalorder %s27, 3
      %p58 = por %p56, %p57
      %p59 = scmp.ne.s32.totalorder %s51, %s54
      %p60 = scmp.eq.s32.totalorder %s27, 0
      %p61 = por %p59, %p60
      %p62 = scmp.ne.s32.totalorder %s51, %s54
      %p63 = scmp.eq.s32.totalorder %s32, 3
      %p64 = por %p62, %p63
      %p65 = scmp.ne.s32.totalorder %s54, %s55
      %p66 = scmp.eq.s32.totalorder %s32, 0
      %p67 = por %p65, %p66
      %p68 = scmp.ne.s32.totalorder %s54, %s55
      %p69 = scmp.eq.s32.totalorder %s33, 3
      %p70 = por %p68, %p69
      %p72 = scmp.ne.s32.totalorder %s55, %s71
      %p73 = scmp.eq.s32.totalorder %s33, 0
      %p74 = por %p72, %p73
      %s75 = ssub.s32 %s34, %s46
      %s76 = ssub.s32 %s35, %s42
      %s77 = sor.u32 %s75, %s76
      %p78 = scmp.eq.s32.totalorder %s77, 0
      %s80 = sadd.s32 %s79, 1
      %s81 = scalar_select %p78, %s79, %s80
      %p84 = pneg %p78
      %p85 = scmp.eq.s32.totalorder %s27, 3
      %p86 = por %p84, %p85
      %p87 = scmp.ne.s32.totalorder %s79, %s82
      %p88 = scmp.eq.s32.totalorder %s27, 0
      %p89 = por %p87, %p88
      %p90 = scmp.ne.s32.totalorder %s79, %s82
      %p91 = scmp.eq.s32.totalorder %s32, 3
      %p92 = por %p90, %p91
      %p93 = scmp.ne.s32.totalorder %s82, %s83
      %p94 = scmp.eq.s32.totalorder %s32, 0
      %p95 = por %p93, %p94
      %p96 = scmp.ne.s32.totalorder %s82, %s83
      %p97 = scmp.eq.s32.totalorder %s33, 3
      %p98 = por %p96, %p97
      %p100 = scmp.ne.s32.totalorder %s83, %s99
      %p101 = scmp.eq.s32.totalorder %s33, 0
      %p102 = por %p100, %p101
      %s104 = sadd.s32 %s103, 1
      %p107 = scmp.eq.s32.totalorder %s27, 3
      %p108 = scmp.ne.s32.totalorder %s103, %s105
      %p109 = scmp.eq.s32.totalorder %s27, 0
      %p110 = por %p108, %p109
      %p111 = scmp.ne.s32.totalorder %s103, %s105
      %p112 = scmp.eq.s32.totalorder %s32, 3
      %p113 = por %p111, %p112
      %p114 = scmp.ne.s32.totalorder %s105, %s106
      %p115 = scmp.eq.s32.totalorder %s32, 0
      %p116 = por %p114, %p115
      %p117 = scmp.ne.s32.totalorder %s105, %s106
      %p118 = scmp.eq.s32.totalorder %s33, 3
      %p119 = por %p117, %p118
      %p121 = scmp.ne.s32.totalorder %s106, %s120
      %p122 = scmp.eq.s32.totalorder %s33, 0
      %p123 = por %p121, %p122
      %s125 = sadd.s32 %s124, 1
      %p128 = scmp.eq.s32.totalorder %s27, 3
      %p129 = scmp.ne.s32.totalorder %s124, %s126
      %p130 = scmp.eq.s32.totalorder %s27, 0
      %p131 = por %p129, %p130
      %p132 = scmp.ne.s32.totalorder %s124, %s126
      %p133 = scmp.eq.s32.totalorder %s32, 3
      %p134 = por %p132, %p133
      %p135 = scmp.ne.s32.totalorder %s126, %s127
      %p136 = scmp.eq.s32.totalorder %s32, 0
      %p137 = por %p135, %p136
      %p138 = scmp.ne.s32.totalorder %s126, %s127
      %p139 = scmp.eq.s32.totalorder %s33, 3
      %p140 = por %p138, %p139
      %p142 = scmp.ne.s32.totalorder %s127, %s141
      %p143 = scmp.eq.s32.totalorder %s33, 0
      %p144 = por %p142, %p143
      %s146 = sadd.s32 %s145, 1
      %p149 = scmp.eq.s32.totalorder %s27, 3
      %p150 = scmp.ne.s32.totalorder %s145, %s147
      %p151 = scmp.eq.s32.totalorder %s27, 0
      %p152 = por %p150, %p151
      %p153 = scmp.ne.s32.totalorder %s145, %s147
      %p154 = scmp.eq.s32.totalorder %s32, 3
      %p155 = por %p153, %p154
      %p156 = scmp.ne.s32.totalorder %s147, %s148
      %p157 = scmp.eq.s32.totalorder %s32, 0
      %p158 = por %p156, %p157
      %p159 = scmp.ne.s32.totalorder %s147, %s148
      %p160 = scmp.eq.s32.totalorder %s33, 3
      %p161 = por %p159, %p160
      %p163 = scmp.ne.s32.totalorder %s148, %s162
      %p164 = scmp.eq.s32.totalorder %s33, 0
      %p165 = por %p163, %p164
      %s167 = sadd.s32 %s166, 1
      %p170 = scmp.eq.s32.totalorder %s27, 3
      %p171 = scmp.ne.s32.totalorder %s166, %s168
      %p172 = scmp.eq.s32.totalorder %s27, 0
      %p173 = por %p171, %p172
      %p174 = scmp.ne.s32.totalorder %s166, %s168
      %p175 = scmp.eq.s32.totalorder %s32, 3
      %p176 = por %p174, %p175
      %p177 = scmp.ne.s32.totalorder %s168, %s169
      %p178 = scmp.eq.s32.totalorder %s32, 0
      %p179 = por %p177, %p178
      %p180 = scmp.ne.s32.totalorder %s168, %s169
      %p181 = scmp.eq.s32.totalorder %s33, 3
      %p182 = por %p180, %p181
      %p184 = scmp.ne.s32.totalorder %s169, %s183
      %p185 = scmp.eq.s32.totalorder %s33, 0
      %p186 = por %p184, %p185
      %s187 = ssub.s32 %s34, %s46
      %s188 = ssub.s32 %s35, %s42
      %s189 = sor.u32 %s187, %s188
      %p190 = scmp.eq.s32.totalorder %s189, 0
      %s192 = sadd.s32 %s191, 1
      %s193 = scalar_select %p190, %s191, %s192
      %p196 = pneg %p190
      %p197 = scmp.eq.s32.totalorder %s27, 3
      %p198 = por %p196, %p197
      %p199 = scmp.ne.s32.totalorder %s191, %s194
      %p200 = scmp.eq.s32.totalorder %s27, 0
      %p201 = por %p199, %p200
      %p202 = scmp.ne.s32.totalorder %s191, %s194
      %p203 = scmp.eq.s32.totalorder %s32, 3
      %p204 = por %p202, %p203
      %p205 = scmp.ne.s32.totalorder %s194, %s195
      %p206 = scmp.eq.s32.totalorder %s32, 0
      %p207 = por %p205, %p206
      %p208 = scmp.ne.s32.totalorder %s194, %s195
      %p209 = scmp.eq.s32.totalorder %s33, 3
      %p210 = por %p208, %p209
      %p212 = scmp.ne.s32.totalorder %s195, %s211
      %p213 = scmp.eq.s32.totalorder %s33, 0
      %p214 = por %p212, %p213
      %s215 = ssub.s32 %s34, %s46
      %s216 = ssub.s32 %s35, %s42
      %s217 = sor.u32 %s215, %s216
      %p218 = scmp.eq.s32.totalorder %s217, 0
      %s220 = sadd.s32 %s219, 1
      %s221 = scalar_select %p218, %s219, %s220
      %p224 = pneg %p218
      %p225 = scmp.eq.s32.totalorder %s27, 3
      %p226 = por %p224, %p225
      %p227 = scmp.ne.s32.totalorder %s219, %s222
      %p228 = scmp.eq.s32.totalorder %s27, 0
      %p229 = por %p227, %p228
      %p230 = scmp.ne.s32.totalorder %s219, %s222
      %p231 = scmp.eq.s32.totalorder %s32, 3
      %p232 = por %p230, %p231
      %p233 = scmp.ne.s32.totalorder %s222, %s223
      %p234 = scmp.eq.s32.totalorder %s32, 0
      %p235 = por %p233, %p234
      %p236 = scmp.ne.s32.totalorder %s222, %s223
      %p237 = scmp.eq.s32.totalorder %s33, 3
      %p238 = por %p236, %p237
      %p240 = scmp.ne.s32.totalorder %s223, %s239
      %p241 = scmp.eq.s32.totalorder %s33, 0
      %p242 = por %p240, %p241
      %p243 = scmp.le.s32.totalorder 1, %s27
      %p244 = scmp.lt.s32.totalorder %s27, 5
      %p245 = pnand %p243, %p244
      %p246 = pneg %p245
      // Predicated region
      $region9: #{tpu_custom_call.1} parent=5 // pred_check
        _
      $region10: #{tpu_custom_call.1} parent=5 // pred_check_branch
        %248 = sbr.rel (%p245) target = $region12
      $region11: #{tpu_custom_call.1} parent=5 // pred_region
        %s249 = ssub.s32 %s27, 1
        // Predicated region
        $region13: #{tpu_custom_call.1} parent=11 // pred_check
          %p250 = pneg %p116
        $region14: #{tpu_custom_call.1} parent=11 // pred_check_branch
          %252 = sbr.rel (%p250) target = $region16
        $region15: #{tpu_custom_call.1} parent=11 // pred_region
          %254 = vsyncadd [#allocation6], 0
          %s255 = sshll.u32 %s2, 4
          %s256 = int_to_ptr.hbm [resolvable:$true] %s255
          %s257 = sshll.u32 [#allocation7], 4
          %s258 = int_to_ptr.vmem [resolvable:$true] %s257
          %263 = dma.hbm_to_vmem [thread:$0]  %s256, 1024, %s258, [#allocation6], 64, 64, 4
        $region16: #{tpu_custom_call.1} parent=11 // pred_fallthru
          _
        // Predicated region
        $region17: #{tpu_custom_call.1} parent=11 // pred_check
          %p264 = pneg %p137
        $region18: #{tpu_custom_call.1} parent=11 // pred_check_branch
          %266 = sbr.rel (%p264) target = $region20
        $region19: #{tpu_custom_call.1} parent=11 // pred_region
          _
        $region20: #{tpu_custom_call.1} parent=11 // pred_fallthru
          _
        // Predicated region
        $region21: #{tpu_custom_call.1} parent=11 // pred_check
          %p267 = pneg %p158
        $region22: #{tpu_custom_call.1} parent=11 // pred_check_branch
          %269 = sbr.rel (%p267) target = $region24
        $region23: #{tpu_custom_call.1} parent=11 // pred_region
          %271 = vsyncadd [#allocation9], 0
          %s272 = sshll.u32 %s4, 4
          %s273 = int_to_ptr.hbm [resolvable:$true] %s272
          %s274 = sshll.u32 [#allocation8], 4
          %s275 = int_to_ptr.vmem [resolvable:$true] %s274
          %280 = dma.hbm_to_vmem [thread:$0]  %s273, 1024, %s275, [#allocation9], 64, 64, 4
        $region24: #{tpu_custom_call.1} parent=11 // pred_fallthru
          _
        // Predicated region
        $region25: #{tpu_custom_call.1} parent=11 // pred_check
          %p281 = pneg %p179
        $region26: #{tpu_custom_call.1} parent=11 // pred_check_branch
          %283 = sbr.rel (%p281) target = $region28
        $region27: #{tpu_custom_call.1} parent=11 // pred_region
          _
        $region28: #{tpu_custom_call.1} parent=11 // pred_fallthru
          _
      $region12: #{tpu_custom_call.1} parent=5 // pred_fallthru
        _
      %p284 = scmp.lt.s32.totalorder %s27, 4
      // Predicated region
      $region29: #{tpu_custom_call.1} parent=5 // pred_check
        %p285 = pneg %p284
      $region30: #{tpu_custom_call.1} parent=5 // pred_check_branch
        %287 = sbr.rel (%p285) target = $region32
      $region31: #{tpu_custom_call.1} parent=5 // pred_region
        // Predicated region
        $region33: #{tpu_custom_call.1} parent=31 // pred_check
          %p288 = pneg %p61
        $region34: #{tpu_custom_call.1} parent=31 // pred_check_branch
          %290 = sbr.rel (%p288) target = $region36
        $region35: #{tpu_custom_call.1} parent=31 // pred_region
          %s291 = sand.u32 %s51, 1
          %s292 = scalar_lea.sflag [#allocation3], %s291
          %s293 = sand.u32 %s51, 1
          %s294 = smul.addr %s293, 256
          %s295 = scalar_lea.vmem [#allocation2], %s294
          %s296 = smul.u32 32, %s35
          %298 = vsyncadd %s292, 0
          %s299 = smul.addr %s34, 64
          %s300 = sadd.s32 %s296, %s299
          %s301 = smul.addr %s300, 8
          %s302 = scalar_lea.hbm %s0, %s301
          %s303 = sshll.u32 %s302, 4
          %s304 = int_to_ptr.hbm [resolvable:$true] %s303
          %s305 = sshll.u32 %s295, 4
          %s306 = int_to_ptr.vmem [resolvable:$true] %s305
          %311 = dma.hbm_to_vmem [thread:$0]  %s304, 4096, %s306, %s292, 128, 128, 8
        $region36: #{tpu_custom_call.1} parent=31 // pred_fallthru
          _
        // Predicated region
        $region37: #{tpu_custom_call.1} parent=31 // pred_check
          %p312 = pneg %p89
        $region38: #{tpu_custom_call.1} parent=31 // pred_check_branch
          %314 = sbr.rel (%p312) target = $region40
        $region39: #{tpu_custom_call.1} parent=31 // pred_region
          %s315 = sand.u32 %s27, 1
          %s316 = scalar_lea.sflag [#allocation6], %s315
          %s317 = sand.u32 %s79, 1
          %s318 = smul.addr %s317, 256
          %s319 = scalar_lea.vmem [#allocation5], %s318
          %s320 = smul.u32 32, %s35
          %322 = vsyncadd %s316, 0
          %s323 = smul.addr %s34, 64
          %s324 = sadd.s32 %s320, %s323
          %s325 = smul.addr %s324, 8
          %s326 = scalar_lea.hbm %s1, %s325
          %s327 = sshll.u32 %s326, 4
          %s328 = int_to_ptr.hbm [resolvable:$true] %s327
          %s329 = sshll.u32 %s319, 4
          %s330 = int_to_ptr.vmem [resolvable:$true] %s329
          %335 = dma.hbm_to_vmem [thread:$0]  %s328, 4096, %s330, %s316, 128, 128, 8
        $region40: #{tpu_custom_call.1} parent=31 // pred_fallthru
          _
      $region32: #{tpu_custom_call.1} parent=5 // pred_fallthru
        _
      %p336 = scmp.le.s32.totalorder 1, %s27
      %p337 = scmp.lt.s32.totalorder %s27, 5
      %p338 = pnand %p336, %p337
      %p339 = pneg %p338
      // Predicated region
      $region41: #{tpu_custom_call.1} parent=5 // pred_check
        _
      $region42: #{tpu_custom_call.1} parent=5 // pred_check_branch
        %341 = sbr.rel (%p338) target = $region44
      $region43: #{tpu_custom_call.1} parent=5 // pred_region
        %s342 = ssub.s32 %s27, 1
        %s343 = sand.u32 %s54, 1
        %s344 = scalar_lea.sflag [#allocation3], %s343
        %s345 = sand.u32 %s54, 1
        %s346 = smul.addr %s345, 256
        %s347 = scalar_lea.vmem [#allocation2], %s346
        // Predicated region
        $region45: #{tpu_custom_call.1} parent=43 // pred_check
          %p348 = pneg %p67
        $region46: #{tpu_custom_call.1} parent=43 // pred_check_branch
          %350 = sbr.rel (%p348) target = $region48
        $region47: #{tpu_custom_call.1} parent=43 // pred_region
          %352 = dma.done %s344, 4096
        $region48: #{tpu_custom_call.1} parent=43 // pred_fallthru
          _
        %s353 = sand.u32 %s32, 1
        %s354 = scalar_lea.sflag [#allocation6], %s353
        %s355 = sand.u32 %s82, 1
        %s356 = smul.addr %s355, 256
        %s357 = scalar_lea.vmem [#allocation5], %s356
        // Predicated region
        $region49: #{tpu_custom_call.1} parent=43 // pred_check
          %p358 = pneg %p95
        $region50: #{tpu_custom_call.1} parent=43 // pred_check_branch
          %360 = sbr.rel (%p358) target = $region52
        $region51: #{tpu_custom_call.1} parent=43 // pred_region
          %362 = dma.done %s354, 4096
        $region52: #{tpu_custom_call.1} parent=43 // pred_fallthru
          _
        // Predicated region
        $region53: #{tpu_custom_call.1} parent=43 // pred_check
          %p363 = pneg %p116
        $region54: #{tpu_custom_call.1} parent=43 // pred_check_branch
          %365 = sbr.rel (%p363) target = $region56
        $region55: #{tpu_custom_call.1} parent=43 // pred_region
          %367 = dma.done [#allocation6], 1024
        $region56: #{tpu_custom_call.1} parent=43 // pred_fallthru
          _
        // Predicated region
        $region57: #{tpu_custom_call.1} parent=43 // pred_check
          %p368 = pneg %p158
        $region58: #{tpu_custom_call.1} parent=43 // pred_check_branch
          %370 = sbr.rel (%p368) target = $region60
        $region59: #{tpu_custom_call.1} parent=43 // pred_region
          %372 = dma.done [#allocation9], 1024
        $region60: #{tpu_custom_call.1} parent=43 // pred_fallthru
          _
        %s373 = sand.u32 %s54, 1
        %s374 = scalar_lea.sflag [#allocation3], %s373
        %s375 = sand.u32 %s54, 1
        %s376 = smul.addr %s375, 256
        %s377 = scalar_lea.vmem [#allocation2], %s376
        %p378 = pneg %p67
        %p379 = pneg %p64
        %s380 = sand.u32 %s32, 1
        %s381 = scalar_lea.sflag [#allocation6], %s380
        %s382 = sand.u32 %s82, 1
        %s383 = smul.addr %s382, 256
        %s384 = scalar_lea.vmem [#allocation5], %s383
        %p385 = pneg %p95
        %p386 = pneg %p92
        %p387 = pneg %p116
        %p388 = pneg %p113
        %p389 = pneg %p137
        %p390 = pneg %p134
        %p391 = pneg %p158
        %p392 = pneg %p155
        %p393 = pneg %p179
        %p394 = pneg %p176
        %p395 = pneg %p207
        %p396 = pneg %p204
        %s397 = sand.u32 %s194, 1
        %s398 = scalar_lea.sflag [#allocation4], %s397
        %s399 = sand.u32 %s194, 1
        %s400 = smul.addr %s399, 128
        %s401 = scalar_lea.vmem [#allocation10], %s400
        %p402 = pneg %p235
        %p403 = pneg %p232
        %s404 = sand.u32 %s222, 1
        %s405 = scalar_lea.sflag [#allocation12], %s404
        %s406 = sand.u32 %s222, 1
        %s407 = smul.addr %s406, 128
        %s408 = scalar_lea.vmem [#allocation11], %s407
        %s409 = smul.u32 32, %s37
        %s410 = smul.u32 32, %s37
        %s411 = smul.u32 32, %s37
        %s412 = smul.u32 32, %s37
        %v413 = vld [vmem:[%s347] sm:$0xff]
        %v414 = vld [vmem:[%s347 + $0x8] sm:$0xff]
        %v415 = vld [vmem:[%s347 + $0x10] sm:$0xff]
        %v416 = vld [vmem:[%s347 + $0x18] sm:$0xff]
        %v417 = vld [vmem:[%s347 + $0x20] sm:$0xff]
        %v418 = vld [vmem:[%s347 + $0x28] sm:$0xff]
        %v419 = vld [vmem:[%s347 + $0x30] sm:$0xff]
        %v420 = vld [vmem:[%s347 + $0x38] sm:$0xff]
        %v421 = vld [vmem:[%s347 + $0x40] sm:$0xff]
        %v422 = vld [vmem:[%s347 + $0x48] sm:$0xff]
        %v423 = vld [vmem:[%s347 + $0x50] sm:$0xff]
        %v424 = vld [vmem:[%s347 + $0x58] sm:$0xff]
        %v425 = vld [vmem:[%s347 + $0x60] sm:$0xff]
        %v426 = vld [vmem:[%s347 + $0x68] sm:$0xff]
        %v427 = vld [vmem:[%s347 + $0x70] sm:$0xff]
        %v428 = vld [vmem:[%s347 + $0x78] sm:$0xff]
        %v429 = vld [vmem:[%s347 + $0x80] sm:$0xff]
        %v430 = vld [vmem:[%s347 + $0x88] sm:$0xff]
        %v431 = vld [vmem:[%s347 + $0x90] sm:$0xff]
        %v432 = vld [vmem:[%s347 + $0x98] sm:$0xff]
        %v433 = vld [vmem:[%s347 + $0xa0] sm:$0xff]
        %v434 = vld [vmem:[%s347 + $0xa8] sm:$0xff]
        %v435 = vld [vmem:[%s347 + $0xb0] sm:$0xff]
        %v436 = vld [vmem:[%s347 + $0xb8] sm:$0xff]
        %v437 = vld [vmem:[%s347 + $0xc0] sm:$0xff]
        %v438 = vld [vmem:[%s347 + $0xc8] sm:$0xff]
        %v439 = vld [vmem:[%s347 + $0xd0] sm:$0xff]
        %v440 = vld [vmem:[%s347 + $0xd8] sm:$0xff]
        %v441 = vld [vmem:[%s347 + $0xe0] sm:$0xff]
        %v442 = vld [vmem:[%s347 + $0xe8] sm:$0xff]
        %v443 = vld [vmem:[%s347 + $0xf0] sm:$0xff]
        %v444 = vld [vmem:[%s347 + $0xf8] sm:$0xff]
        %v445 = vpack.c.bf16 %v414, %v413
        %v446 = vpack.c.bf16 %v416, %v415
        %v447 = vpack.c.bf16 %v418, %v417
        %v448 = vpack.c.bf16 %v420, %v419
        %v449 = vpack.c.bf16 %v422, %v421
        %v450 = vpack.c.bf16 %v424, %v423
        %v451 = vpack.c.bf16 %v426, %v425
        %v452 = vpack.c.bf16 %v428, %v427
        %v453 = vpack.c.bf16 %v430, %v429
        %v454 = vpack.c.bf16 %v432, %v431
        %v455 = vpack.c.bf16 %v434, %v433
        %v456 = vpack.c.bf16 %v436, %v435
        %v457 = vpack.c.bf16 %v438, %v437
        %v458 = vpack.c.bf16 %v440, %v439
        %v459 = vpack.c.bf16 %v442, %v441
        %v460 = vpack.c.bf16 %v444, %v443
        %v461 = vld [vmem:[%s357] sm:$0xff]
        %v462 = vld [vmem:[%s357 + $0x8] sm:$0xff]
        %v463 = vld [vmem:[%s357 + $0x10] sm:$0xff]
        %v464 = vld [vmem:[%s357 + $0x18] sm:$0xff]
        %v465 = vld [vmem:[%s357 + $0x20] sm:$0xff]
        %v466 = vld [vmem:[%s357 + $0x28] sm:$0xff]
        %v467 = vld [vmem:[%s357 + $0x30] sm:$0xff]
        %v468 = vld [vmem:[%s357 + $0x38] sm:$0xff]
        %v469 = vld [vmem:[%s357 + $0x40] sm:$0xff]
        %v470 = vld [vmem:[%s357 + $0x48] sm:$0xff]
        %v471 = vld [vmem:[%s357 + $0x50] sm:$0xff]
        %v472 = vld [vmem:[%s357 + $0x58] sm:$0xff]
        %v473 = vld [vmem:[%s357 + $0x60] sm:$0xff]
        %v474 = vld [vmem:[%s357 + $0x68] sm:$0xff]
        %v475 = vld [vmem:[%s357 + $0x70] sm:$0xff]
        %v476 = vld [vmem:[%s357 + $0x78] sm:$0xff]
        %v477 = vld [vmem:[%s357 + $0x80] sm:$0xff]
        %v478 = vld [vmem:[%s357 + $0x88] sm:$0xff]
        %v479 = vld [vmem:[%s357 + $0x90] sm:$0xff]
        %v480 = vld [vmem:[%s357 + $0x98] sm:$0xff]
        %v481 = vld [vmem:[%s357 + $0xa0] sm:$0xff]
        %v482 = vld [vmem:[%s357 + $0xa8] sm:$0xff]
        %v483 = vld [vmem:[%s357 + $0xb0] sm:$0xff]
        %v484 = vld [vmem:[%s357 + $0xb8] sm:$0xff]
        %v485 = vld [vmem:[%s357 + $0xc0] sm:$0xff]
        %v486 = vld [vmem:[%s357 + $0xc8] sm:$0xff]
        %v487 = vld [vmem:[%s357 + $0xd0] sm:$0xff]
        %v488 = vld [vmem:[%s357 + $0xd8] sm:$0xff]
        %v489 = vld [vmem:[%s357 + $0xe0] sm:$0xff]
        %v490 = vld [vmem:[%s357 + $0xe8] sm:$0xff]
        %v491 = vld [vmem:[%s357 + $0xf0] sm:$0xff]
        %v492 = vld [vmem:[%s357 + $0xf8] sm:$0xff]
        %v493 = vpack.c.bf16 %v462, %v461
        %v494 = vpack.c.bf16 %v464, %v463
        %v495 = vpack.c.bf16 %v466, %v465
        %v496 = vpack.c.bf16 %v468, %v467
        %v497 = vpack.c.bf16 %v470, %v469
        %v498 = vpack.c.bf16 %v472, %v471
        %v499 = vpack.c.bf16 %v474, %v473
        %v500 = vpack.c.bf16 %v476, %v475
        %v501 = vpack.c.bf16 %v478, %v477
        %v502 = vpack.c.bf16 %v480, %v479
        %v503 = vpack.c.bf16 %v482, %v481
        %v504 = vpack.c.bf16 %v484, %v483
        %v505 = vpack.c.bf16 %v486, %v485
        %v506 = vpack.c.bf16 %v488, %v487
        %v507 = vpack.c.bf16 %v490, %v489
        %v508 = vpack.c.bf16 %v492, %v491
        %v509 = vld [vmem:[#allocation7] sm:$0xf]
        %v510 = vld [vmem:[#allocation7 + $0x4] sm:$0xf]
        %v511 = vld [vmem:[#allocation7 + $0x8] sm:$0xf]
        %v512 = vld [vmem:[#allocation7 + $0xc] sm:$0xf]
        %v513 = vld [vmem:[#allocation7 + $0x10] sm:$0xf]
        %v514 = vld [vmem:[#allocation7 + $0x14] sm:$0xf]
        %v515 = vld [vmem:[#allocation7 + $0x18] sm:$0xf]
        %v516 = vld [vmem:[#allocation7 + $0x1c] sm:$0xf]
        %v517 = vld [vmem:[#allocation7 + $0x20] sm:$0xf]
        %v518 = vld [vmem:[#allocation7 + $0x24] sm:$0xf]
        %v519 = vld [vmem:[#allocation7 + $0x28] sm:$0xf]
        %v520 = vld [vmem:[#allocation7 + $0x2c] sm:$0xf]
        %v521 = vld [vmem:[#allocation7 + $0x30] sm:$0xf]
        %v522 = vld [vmem:[#allocation7 + $0x34] sm:$0xf]
        %v523 = vld [vmem:[#allocation7 + $0x38] sm:$0xf]
        %v524 = vld [vmem:[#allocation7 + $0x3c] sm:$0xf]
        %v525 = vld [vmem:[%s3] sm:$0x1]
        %v527 = vperm.slane %v525, 0
        %v545 = vunpack.c.l.b16 %v509
        %v546 = vunpack.c.l.b16 %v510
        %v547 = vunpack.c.l.b16 %v511
        %v548 = vunpack.c.l.b16 %v512
        %v549 = vunpack.c.l.b16 %v513
        %v550 = vunpack.c.l.b16 %v514
        %v551 = vunpack.c.l.b16 %v515
        %v552 = vunpack.c.l.b16 %v516
        %v553 = vunpack.c.l.b16 %v517
        %v554 = vunpack.c.l.b16 %v518
        %v555 = vunpack.c.l.b16 %v519
        %v556 = vunpack.c.l.b16 %v520
        %v557 = vunpack.c.l.b16 %v521
        %v558 = vunpack.c.l.b16 %v522
        %v559 = vunpack.c.l.b16 %v523
        %v560 = vunpack.c.l.b16 %v524
        %v561 = vpack.c.b16 %v546, %v545
        %v562 = vpack.c.b16 %v548, %v547
        %v563 = vpack.c.b16 %v550, %v549
        %v564 = vpack.c.b16 %v552, %v551
        %v565 = vpack.c.b16 %v554, %v553
        %v566 = vpack.c.b16 %v556, %v555
        %v567 = vpack.c.b16 %v558, %v557
        %v568 = vpack.c.b16 %v560, %v559
        %577 = vmatpush.bf16.msra.mxu0 %v568
        %578 = vmatpush.bf16.msra.mxu0 %v567
        %579 = vmatpush.bf16.msra.mxu0 %v566
        %580 = vmatpush.bf16.msra.mxu0 %v565
        %581 = vmatpush.bf16.msra.mxu0 %v564
        %582 = vmatpush.bf16.msra.mxu0 %v563
        %583 = vmatpush.bf16.msra.mxu0 %v562
        %584 = vmatpush.bf16.msra.mxu0 %v561
        %585 = vmatmul.bf16.gmra.mxu0 %v445
        %v586 = vpop.f32.mrf.mxu0
        %v587 = vadd.f32 %v527, %v586
        %v588 = vpop.f32.mrf.mxu0
        %v589 = vadd.f32 %v527, %v588
        %590 = vmatmul.bf16.gmra.mxu0 %v446
        %v591 = vpop.f32.mrf.mxu0
        %v592 = vadd.f32 %v527, %v591
        %v593 = vpop.f32.mrf.mxu0
        %v594 = vadd.f32 %v527, %v593
        %595 = vmatmul.bf16.gmra.mxu0 %v447
        %v596 = vpop.f32.mrf.mxu0
        %v597 = vadd.f32 %v527, %v596
        %v598 = vpop.f32.mrf.mxu0
        %v599 = vadd.f32 %v527, %v598
        %600 = vmatmul.bf16.gmra.mxu0 %v448
        %v601 = vpop.f32.mrf.mxu0
        %v602 = vadd.f32 %v527, %v601
        %v603 = vpop.f32.mrf.mxu0
        %v604 = vadd.f32 %v527, %v603
        %605 = vmatmul.bf16.gmra.mxu0 %v449
        %v606 = vpop.f32.mrf.mxu0
        %v607 = vadd.f32 %v527, %v606
        %v608 = vpop.f32.mrf.mxu0
        %v609 = vadd.f32 %v527, %v608
        %610 = vmatmul.bf16.gmra.mxu0 %v450
        %v611 = vpop.f32.mrf.mxu0
        %v612 = vadd.f32 %v527, %v611
        %v613 = vpop.f32.mrf.mxu0
        %v614 = vadd.f32 %v527, %v613
        %615 = vmatmul.bf16.gmra.mxu0 %v451
        %v616 = vpop.f32.mrf.mxu0
        %v617 = vadd.f32 %v527, %v616
        %v618 = vpop.f32.mrf.mxu0
        %v619 = vadd.f32 %v527, %v618
        %620 = vmatmul.bf16.gmra.mxu0 %v452
        %v621 = vpop.f32.mrf.mxu0
        %v622 = vadd.f32 %v527, %v621
        %v623 = vpop.f32.mrf.mxu0
        %v624 = vadd.f32 %v527, %v623
        %625 = vmatmul.bf16.gmra.mxu0 %v453
        %v626 = vpop.f32.mrf.mxu0
        %v627 = vadd.f32 %v527, %v626
        %v628 = vpop.f32.mrf.mxu0
        %v629 = vadd.f32 %v527, %v628
        %630 = vmatmul.bf16.gmra.mxu0 %v454
        %v631 = vpop.f32.mrf.mxu0
        %v632 = vadd.f32 %v527, %v631
        %v633 = vpop.f32.mrf.mxu0
        %v634 = vadd.f32 %v527, %v633
        %635 = vmatmul.bf16.gmra.mxu0 %v455
        %v636 = vpop.f32.mrf.mxu0
        %v637 = vadd.f32 %v527, %v636
        %v638 = vpop.f32.mrf.mxu0
        %v639 = vadd.f32 %v527, %v638
        %640 = vmatmul.bf16.gmra.mxu0 %v456
        %v641 = vpop.f32.mrf.mxu0
        %v642 = vadd.f32 %v527, %v641
        %v643 = vpop.f32.mrf.mxu0
        %v644 = vadd.f32 %v527, %v643
        %645 = vmatmul.bf16.gmra.mxu0 %v457
        %v646 = vpop.f32.mrf.mxu0
        %v647 = vadd.f32 %v527, %v646
        %v648 = vpop.f32.mrf.mxu0
        %v649 = vadd.f32 %v527, %v648
        %650 = vmatmul.bf16.gmra.mxu0 %v458
        %v651 = vpop.f32.mrf.mxu0
        %v652 = vadd.f32 %v527, %v651
        %v653 = vpop.f32.mrf.mxu0
        %v654 = vadd.f32 %v527, %v653
        %655 = vmatmul.bf16.gmra.mxu0 %v459
        %v656 = vpop.f32.mrf.mxu0
        %v657 = vadd.f32 %v527, %v656
        %v658 = vpop.f32.mrf.mxu0
        %v659 = vadd.f32 %v527, %v658
        %660 = vmatmul.bf16.gmra.mxu0 %v460
        %v661 = vpop.f32.mrf.mxu0
        %v662 = vadd.f32 %v527, %v661
        %v663 = vpop.f32.mrf.mxu0
        %v664 = vadd.f32 %v527, %v663
        %665 = vdwg.mxu0
        %v666 = vld [vmem:[#allocation8] sm:$0xf]
        %v667 = vld [vmem:[#allocation8 + $0x4] sm:$0xf]
        %v668 = vld [vmem:[#allocation8 + $0x8] sm:$0xf]
        %v669 = vld [vmem:[#allocation8 + $0xc] sm:$0xf]
        %v670 = vld [vmem:[#allocation8 + $0x10] sm:$0xf]
        %v671 = vld [vmem:[#allocation8 + $0x14] sm:$0xf]
        %v672 = vld [vmem:[#allocation8 + $0x18] sm:$0xf]
        %v673 = vld [vmem:[#allocation8 + $0x1c] sm:$0xf]
        %v674 = vld [vmem:[#allocation8 + $0x20] sm:$0xf]
        %v675 = vld [vmem:[#allocation8 + $0x24] sm:$0xf]
        %v676 = vld [vmem:[#allocation8 + $0x28] sm:$0xf]
        %v677 = vld [vmem:[#allocation8 + $0x2c] sm:$0xf]
        %v678 = vld [vmem:[#allocation8 + $0x30] sm:$0xf]
        %v679 = vld [vmem:[#allocation8 + $0x34] sm:$0xf]
        %v680 = vld [vmem:[#allocation8 + $0x38] sm:$0xf]
        %v681 = vld [vmem:[#allocation8 + $0x3c] sm:$0xf]
        %v682 = vld [vmem:[%s5] sm:$0x1]
        %v684 = vperm.slane %v682, 0
        %v702 = vunpack.c.l.b16 %v666
        %v703 = vunpack.c.l.b16 %v667
        %v704 = vunpack.c.l.b16 %v668
        %v705 = vunpack.c.l.b16 %v669
        %v706 = vunpack.c.l.b16 %v670
        %v707 = vunpack.c.l.b16 %v671
        %v708 = vunpack.c.l.b16 %v672
        %v709 = vunpack.c.l.b16 %v673
        %v710 = vunpack.c.l.b16 %v674
        %v711 = vunpack.c.l.b16 %v675
        %v712 = vunpack.c.l.b16 %v676
        %v713 = vunpack.c.l.b16 %v677
        %v714 = vunpack.c.l.b16 %v678
        %v715 = vunpack.c.l.b16 %v679
        %v716 = vunpack.c.l.b16 %v680
        %v717 = vunpack.c.l.b16 %v681
        %v718 = vpack.c.b16 %v703, %v702
        %v719 = vpack.c.b16 %v705, %v704
        %v720 = vpack.c.b16 %v707, %v706
        %v721 = vpack.c.b16 %v709, %v708
        %v722 = vpack.c.b16 %v711, %v710
        %v723 = vpack.c.b16 %v713, %v712
        %v724 = vpack.c.b16 %v715, %v714
        %v725 = vpack.c.b16 %v717, %v716
        %734 = vmatpush.bf16.msra.mxu0 %v725
        %735 = vmatpush.bf16.msra.mxu0 %v724
        %736 = vmatpush.bf16.msra.mxu0 %v723
        %737 = vmatpush.bf16.msra.mxu0 %v722
        %738 = vmatpush.bf16.msra.mxu0 %v721
        %739 = vmatpush.bf16.msra.mxu0 %v720
        %740 = vmatpush.bf16.msra.mxu0 %v719
        %741 = vmatpush.bf16.msra.mxu0 %v718
        %742 = vmatmul.bf16.gmra.mxu0 %v493
        %v743 = vpop.f32.mrf.mxu0
        %v744 = vadd.f32 %v684, %v743
        %v745 = vpop.f32.mrf.mxu0
        %v746 = vadd.f32 %v684, %v745
        %747 = vmatmul.bf16.gmra.mxu0 %v494
        %v748 = vpop.f32.mrf.mxu0
        %v749 = vadd.f32 %v684, %v748
        %v750 = vpop.f32.mrf.mxu0
        %v751 = vadd.f32 %v684, %v750
        %752 = vmatmul.bf16.gmra.mxu0 %v495
        %v753 = vpop.f32.mrf.mxu0
        %v754 = vadd.f32 %v684, %v753
        %v755 = vpop.f32.mrf.mxu0
        %v756 = vadd.f32 %v684, %v755
        %757 = vmatmul.bf16.gmra.mxu0 %v496
        %v758 = vpop.f32.mrf.mxu0
        %v759 = vadd.f32 %v684, %v758
        %v760 = vpop.f32.mrf.mxu0
        %v761 = vadd.f32 %v684, %v760
        %762 = vmatmul.bf16.gmra.mxu0 %v497
        %v763 = vpop.f32.mrf.mxu0
        %v764 = vadd.f32 %v684, %v763
        %v765 = vpop.f32.mrf.mxu0
        %v766 = vadd.f32 %v684, %v765
        %767 = vmatmul.bf16.gmra.mxu0 %v498
        %v768 = vpop.f32.mrf.mxu0
        %v769 = vadd.f32 %v684, %v768
        %v770 = vpop.f32.mrf.mxu0
        %v771 = vadd.f32 %v684, %v770
        %772 = vmatmul.bf16.gmra.mxu0 %v499
        %v773 = vpop.f32.mrf.mxu0
        %v774 = vadd.f32 %v684, %v773
        %v775 = vpop.f32.mrf.mxu0
        %v776 = vadd.f32 %v684, %v775
        %777 = vmatmul.bf16.gmra.mxu0 %v500
        %v778 = vpop.f32.mrf.mxu0
        %v779 = vadd.f32 %v684, %v778
        %v780 = vpop.f32.mrf.mxu0
        %v781 = vadd.f32 %v684, %v780
        %782 = vmatmul.bf16.gmra.mxu0 %v501
        %v783 = vpop.f32.mrf.mxu0
        %v784 = vadd.f32 %v684, %v783
        %v785 = vpop.f32.mrf.mxu0
        %v786 = vadd.f32 %v684, %v785
        %787 = vmatmul.bf16.gmra.mxu0 %v502
        %v788 = vpop.f32.mrf.mxu0
        %v789 = vadd.f32 %v684, %v788
        %v790 = vpop.f32.mrf.mxu0
        %v791 = vadd.f32 %v684, %v790
        %792 = vmatmul.bf16.gmra.mxu0 %v503
        %v793 = vpop.f32.mrf.mxu0
        %v794 = vadd.f32 %v684, %v793
        %v795 = vpop.f32.mrf.mxu0
        %v796 = vadd.f32 %v684, %v795
        %797 = vmatmul.bf16.gmra.mxu0 %v504
        %v798 = vpop.f32.mrf.mxu0
        %v799 = vadd.f32 %v684, %v798
        %v800 = vpop.f32.mrf.mxu0
        %v801 = vadd.f32 %v684, %v800
        %802 = vmatmul.bf16.gmra.mxu0 %v505
        %v803 = vpop.f32.mrf.mxu0
        %v804 = vadd.f32 %v684, %v803
        %v805 = vpop.f32.mrf.mxu0
        %v806 = vadd.f32 %v684, %v805
        %807 = vmatmul.bf16.gmra.mxu0 %v506
        %v808 = vpop.f32.mrf.mxu0
        %v809 = vadd.f32 %v684, %v808
        %v810 = vpop.f32.mrf.mxu0
        %v811 = vadd.f32 %v684, %v810
        %812 = vmatmul.bf16.gmra.mxu0 %v507
        %v813 = vpop.f32.mrf.mxu0
        %v814 = vadd.f32 %v684, %v813
        %v815 = vpop.f32.mrf.mxu0
        %v816 = vadd.f32 %v684, %v815
        %817 = vmatmul.bf16.gmra.mxu0 %v508
        %v818 = vpop.f32.mrf.mxu0
        %v819 = vadd.f32 %v684, %v818
        %v820 = vpop.f32.mrf.mxu0
        %v821 = vadd.f32 %v684, %v820
        %822 = vdwg.mxu0
        %v823 = vpack.c.bf16 %v587, %v587
        %v824 = vpack.c.bf16 %v589, %v589
        %v825 = vpack.c.bf16 %v592, %v592
        %v826 = vpack.c.bf16 %v594, %v594
        %v827 = vpack.c.bf16 %v597, %v597
        %v828 = vpack.c.bf16 %v599, %v599
        %v829 = vpack.c.bf16 %v602, %v602
        %v830 = vpack.c.bf16 %v604, %v604
        %v831 = vpack.c.bf16 %v607, %v607
        %v832 = vpack.c.bf16 %v609, %v609
        %v833 = vpack.c.bf16 %v612, %v612
        %v834 = vpack.c.bf16 %v614, %v614
        %v835 = vpack.c.bf16 %v617, %v617
        %v836 = vpack.c.bf16 %v619, %v619
        %v837 = vpack.c.bf16 %v622, %v622
        %v838 = vpack.c.bf16 %v624, %v624
        %v839 = vpack.c.bf16 %v627, %v627
        %v840 = vpack.c.bf16 %v629, %v629
        %v841 = vpack.c.bf16 %v632, %v632
        %v842 = vpack.c.bf16 %v634, %v634
        %v843 = vpack.c.bf16 %v637, %v637
        %v844 = vpack.c.bf16 %v639, %v639
        %v845 = vpack.c.bf16 %v642, %v642
        %v846 = vpack.c.bf16 %v644, %v644
        %v847 = vpack.c.bf16 %v647, %v647
        %v848 = vpack.c.bf16 %v649, %v649
        %v849 = vpack.c.bf16 %v652, %v652
        %v850 = vpack.c.bf16 %v654, %v654
        %v851 = vpack.c.bf16 %v657, %v657
        %v852 = vpack.c.bf16 %v659, %v659
        %v853 = vpack.c.bf16 %v662, %v662
        %v854 = vpack.c.bf16 %v664, %v664
        %855 = vst [vmem:[%s401] sm:$0xf] %v823
        %856 = vst [vmem:[%s401 + $0x4] sm:$0xf] %v824
        %857 = vst [vmem:[%s401 + $0x8] sm:$0xf] %v825
        %858 = vst [vmem:[%s401 + $0xc] sm:$0xf] %v826
        %859 = vst [vmem:[%s401 + $0x10] sm:$0xf] %v827
        %860 = vst [vmem:[%s401 + $0x14] sm:$0xf] %v828
        %861 = vst [vmem:[%s401 + $0x18] sm:$0xf] %v829
        %862 = vst [vmem:[%s401 + $0x1c] sm:$0xf] %v830
        %863 = vst [vmem:[%s401 + $0x20] sm:$0xf] %v831
        %864 = vst [vmem:[%s401 + $0x24] sm:$0xf] %v832
        %865 = vst [vmem:[%s401 + $0x28] sm:$0xf] %v833
        %866 = vst [vmem:[%s401 + $0x2c] sm:$0xf] %v834
        %867 = vst [vmem:[%s401 + $0x30] sm:$0xf] %v835
        %868 = vst [vmem:[%s401 + $0x34] sm:$0xf] %v836
        %869 = vst [vmem:[%s401 + $0x38] sm:$0xf] %v837
        %870 = vst [vmem:[%s401 + $0x3c] sm:$0xf] %v838
        %871 = vst [vmem:[%s401 + $0x40] sm:$0xf] %v839
        %872 = vst [vmem:[%s401 + $0x44] sm:$0xf] %v840
        %873 = vst [vmem:[%s401 + $0x48] sm:$0xf] %v841
        %874 = vst [vmem:[%s401 + $0x4c] sm:$0xf] %v842
        %875 = vst [vmem:[%s401 + $0x50] sm:$0xf] %v843
        %876 = vst [vmem:[%s401 + $0x54] sm:$0xf] %v844
        %877 = vst [vmem:[%s401 + $0x58] sm:$0xf] %v845
        %878 = vst [vmem:[%s401 + $0x5c] sm:$0xf] %v846
        %879 = vst [vmem:[%s401 + $0x60] sm:$0xf] %v847
        %880 = vst [vmem:[%s401 + $0x64] sm:$0xf] %v848
        %881 = vst [vmem:[%s401 + $0x68] sm:$0xf] %v849
        %882 = vst [vmem:[%s401 + $0x6c] sm:$0xf] %v850
        %883 = vst [vmem:[%s401 + $0x70] sm:$0xf] %v851
        %884 = vst [vmem:[%s401 + $0x74] sm:$0xf] %v852
        %885 = vst [vmem:[%s401 + $0x78] sm:$0xf] %v853
        %886 = vst [vmem:[%s401 + $0x7c] sm:$0xf] %v854
        %v887 = vpack.c.bf16 %v744, %v744
        %v888 = vpack.c.bf16 %v746, %v746
        %v889 = vpack.c.bf16 %v749, %v749
        %v890 = vpack.c.bf16 %v751, %v751
        %v891 = vpack.c.bf16 %v754, %v754
        %v892 = vpack.c.bf16 %v756, %v756
        %v893 = vpack.c.bf16 %v759, %v759
        %v894 = vpack.c.bf16 %v761, %v761
        %v895 = vpack.c.bf16 %v764, %v764
        %v896 = vpack.c.bf16 %v766, %v766
        %v897 = vpack.c.bf16 %v769, %v769
        %v898 = vpack.c.bf16 %v771, %v771
        %v899 = vpack.c.bf16 %v774, %v774
        %v900 = vpack.c.bf16 %v776, %v776
        %v901 = vpack.c.bf16 %v779, %v779
        %v902 = vpack.c.bf16 %v781, %v781
        %v903 = vpack.c.bf16 %v784, %v784
        %v904 = vpack.c.bf16 %v786, %v786
        %v905 = vpack.c.bf16 %v789, %v789
        %v906 = vpack.c.bf16 %v791, %v791
        %v907 = vpack.c.bf16 %v794, %v794
        %v908 = vpack.c.bf16 %v796, %v796
        %v909 = vpack.c.bf16 %v799, %v799
        %v910 = vpack.c.bf16 %v801, %v801
        %v911 = vpack.c.bf16 %v804, %v804
        %v912 = vpack.c.bf16 %v806, %v806
        %v913 = vpack.c.bf16 %v809, %v809
        %v914 = vpack.c.bf16 %v811, %v811
        %v915 = vpack.c.bf16 %v814, %v814
        %v916 = vpack.c.bf16 %v816, %v816
        %v917 = vpack.c.bf16 %v819, %v819
        %v918 = vpack.c.bf16 %v821, %v821
        %919 = vst [vmem:[%s408] sm:$0xf] %v887
        %920 = vst [vmem:[%s408 + $0x4] sm:$0xf] %v888
        %921 = vst [vmem:[%s408 + $0x8] sm:$0xf] %v889
        %922 = vst [vmem:[%s408 + $0xc] sm:$0xf] %v890
        %923 = vst [vmem:[%s408 + $0x10] sm:$0xf] %v891
        %924 = vst [vmem:[%s408 + $0x14] sm:$0xf] %v892
        %925 = vst [vmem:[%s408 + $0x18] sm:$0xf] %v893
        %926 = vst [vmem:[%s408 + $0x1c] sm:$0xf] %v894
        %927 = vst [vmem:[%s408 + $0x20] sm:$0xf] %v895
        %928 = vst [vmem:[%s408 + $0x24] sm:$0xf] %v896
        %929 = vst [vmem:[%s408 + $0x28] sm:$0xf] %v897
        %930 = vst [vmem:[%s408 + $0x2c] sm:$0xf] %v898
        %931 = vst [vmem:[%s408 + $0x30] sm:$0xf] %v899
        %932 = vst [vmem:[%s408 + $0x34] sm:$0xf] %v900
        %933 = vst [vmem:[%s408 + $0x38] sm:$0xf] %v901
        %934 = vst [vmem:[%s408 + $0x3c] sm:$0xf] %v902
        %935 = vst [vmem:[%s408 + $0x40] sm:$0xf] %v903
        %936 = vst [vmem:[%s408 + $0x44] sm:$0xf] %v904
        %937 = vst [vmem:[%s408 + $0x48] sm:$0xf] %v905
        %938 = vst [vmem:[%s408 + $0x4c] sm:$0xf] %v906
        %939 = vst [vmem:[%s408 + $0x50] sm:$0xf] %v907
        %940 = vst [vmem:[%s408 + $0x54] sm:$0xf] %v908
        %941 = vst [vmem:[%s408 + $0x58] sm:$0xf] %v909
        %942 = vst [vmem:[%s408 + $0x5c] sm:$0xf] %v910
        %943 = vst [vmem:[%s408 + $0x60] sm:$0xf] %v911
        %944 = vst [vmem:[%s408 + $0x64] sm:$0xf] %v912
        %945 = vst [vmem:[%s408 + $0x68] sm:$0xf] %v913
        %946 = vst [vmem:[%s408 + $0x6c] sm:$0xf] %v914
        %947 = vst [vmem:[%s408 + $0x70] sm:$0xf] %v915
        %948 = vst [vmem:[%s408 + $0x74] sm:$0xf] %v916
        %949 = vst [vmem:[%s408 + $0x78] sm:$0xf] %v917
        %950 = vst [vmem:[%s408 + $0x7c] sm:$0xf] %v918
        %s951 = sand.u32 %s194, 1
        %s952 = scalar_lea.sflag [#allocation4], %s951
        %s953 = sand.u32 %s194, 1
        %s954 = smul.addr %s953, 128
        %s955 = scalar_lea.vmem [#allocation10], %s954
        %s956 = sand.u32 %s222, 1
        %s957 = scalar_lea.sflag [#allocation12], %s956
        %s958 = sand.u32 %s222, 1
        %s959 = smul.addr %s958, 128
        %s960 = scalar_lea.vmem [#allocation11], %s959
        // Predicated region
        $region61: #{tpu_custom_call.1} parent=43 // pred_check
          %p961 = pneg %p204
        $region62: #{tpu_custom_call.1} parent=43 // pred_check_branch
          %963 = sbr.rel (%p961) target = $region64
        $region63: #{tpu_custom_call.1} parent=43 // pred_region
          %s964 = smul.u32 32, %s37
          %966 = vsyncadd %s952, 0
          %s967 = smul.addr %s36, 64
          %s968 = sadd.s32 %s964, %s967
          %s969 = smul.addr %s968, 4
          %s970 = scalar_lea.hbm %s6, %s969
          %s971 = sshll.u32 %s955, 4
          %s972 = int_to_ptr.vmem [resolvable:$true] %s971
          %s973 = sshll.u32 %s970, 4
          %s974 = int_to_ptr.hbm [resolvable:$true] %s973
          %979 = dma.vmem_to_hbm [thread:$0]  %s972, 2048, %s974, %s952, 64, 64, 4
        $region64: #{tpu_custom_call.1} parent=43 // pred_fallthru
          _
        // Predicated region
        $region65: #{tpu_custom_call.1} parent=43 // pred_check
          %p980 = pneg %p232
        $region66: #{tpu_custom_call.1} parent=43 // pred_check_branch
          %982 = sbr.rel (%p980) target = $region68
        $region67: #{tpu_custom_call.1} parent=43 // pred_region
          %s983 = smul.u32 32, %s37
          %985 = vsyncadd %s957, 0
          %s986 = smul.addr %s36, 64
          %s987 = sadd.s32 %s983, %s986
          %s988 = smul.addr %s987, 4
          %s989 = scalar_lea.hbm %s7, %s988
          %s990 = sshll.u32 %s960, 4
          %s991 = int_to_ptr.vmem [resolvable:$true] %s990
          %s992 = sshll.u32 %s989, 4
          %s993 = int_to_ptr.hbm [resolvable:$true] %s992
          %998 = dma.vmem_to_hbm [thread:$0]  %s991, 2048, %s993, %s957, 64, 64, 4
        $region68: #{tpu_custom_call.1} parent=43 // pred_fallthru
          _
      $region44: #{tpu_custom_call.1} parent=5 // pred_fallthru
        _
      %p999 = scmp.le.s32.totalorder 2, %s27
      // Predicated region
      $region69: #{tpu_custom_call.1} parent=5 // pred_check
        %p1000 = pneg %p999
      $region70: #{tpu_custom_call.1} parent=5 // pred_check_branch
        %1002 = sbr.rel (%p1000) target = $region72
      $region71: #{tpu_custom_call.1} parent=5 // pred_region
        %s1003 = ssub.s32 %s27, 2
        // Predicated region
        $region73: #{tpu_custom_call.1} parent=71 // pred_check
          %p1004 = pneg %p210
        $region74: #{tpu_custom_call.1} parent=71 // pred_check_branch
          %1006 = sbr.rel (%p1004) target = $region76
        $region75: #{tpu_custom_call.1} parent=71 // pred_region
          %s1007 = sand.u32 %s195, 1
          %s1008 = scalar_lea.sflag [#allocation4], %s1007
          %s1009 = sand.u32 %s195, 1
          %s1010 = smul.addr %s1009, 128
          %s1011 = scalar_lea.vmem [#allocation10], %s1010
          %1013 = dma.done %s1008, 2048
        $region76: #{tpu_custom_call.1} parent=71 // pred_fallthru
          _
        // Predicated region
        $region77: #{tpu_custom_call.1} parent=71 // pred_check
          %p1014 = pneg %p238
        $region78: #{tpu_custom_call.1} parent=71 // pred_check_branch
          %1016 = sbr.rel (%p1014) target = $region80
        $region79: #{tpu_custom_call.1} parent=71 // pred_region
          %s1017 = sand.u32 %s223, 1
          %s1018 = scalar_lea.sflag [#allocation12], %s1017
          %s1019 = sand.u32 %s223, 1
          %s1020 = smul.addr %s1019, 128
          %s1021 = scalar_lea.vmem [#allocation11], %s1020
          %1023 = dma.done %s1018, 2048
        $region80: #{tpu_custom_call.1} parent=71 // pred_fallthru
          _
      $region72: #{tpu_custom_call.1} parent=5 // pred_fallthru
        _
    $region6: #{tpu_custom_call.1} parent=1 // loop_footer
      %s31 = sadd.s32 1, %s27
    $region7: #{tpu_custom_call.1} parent=1 // loop_footer_branch
      %26 = sbr.rel target = $region3
    $region8: #{tpu_custom_call.1} parent=1 // loop_exit
      _
    %1024 = vsyncpa [#allocation3], 1
    %s1025 = scalar_lea.sflag [#allocation3], 1
    %1026 = vsyncpa %s1025, 1
    %1027 = vsyncpa [#allocation6], 1
    %s1028 = scalar_lea.sflag [#allocation6], 1
    %1029 = vsyncpa %s1028, 1
    %1030 = vsyncpa [#allocation9], 1
    %1031 = vsyncpa [#allocation4], 1
    %s1032 = scalar_lea.sflag [#allocation4], 1
    %1033 = vsyncpa %s1032, 1
    %1034 = vsyncpa [#allocation12], 1
    %s1035 = scalar_lea.sflag [#allocation12], 1
    %1036 = vsyncpa %s1035, 1

</llo_original>
